<compile_context>
chip_gen: v6e
topology: v6e:2x2x1
jax: 0.10.0
libtpu: 0.0.40
codegen_flags: <defaults>
</compile_context>

<pallas_src>
import functools

import jax
import jax.numpy as jnp
from jax.experimental import pallas as pl
from jax.experimental.pallas import tpu as pltpu


def _round_up(x, m):
    return ((x + m - 1) // m) * m


def _default_num_parallel_cores():
    """Best-effort TensorCores-per-chip for the leading 'parallel' grid axis."""
    try:
        kind = jax.devices()[0].device_kind.lower()
    except Exception:  # pragma: no cover - defensive
        return 1
    # Single-TensorCore chips (v5e / v6e "lite" parts): the 2-way split only
    # adds init/finalize overhead there, so skip it. Unknown / newer chips
    # (v7x, megacore) default to 2; the cost of being wrong is negligible.
    if "lite" in kind or "v5e" in kind or "v6e" in kind:
        return 1
    return 2


def _focal_loss_kernel(logits_ref, label_ref, out_ref, acc_ref, *,
                       alpha, gamma, inv_count, total, lane, block_rows,
                       blocks_per_par, acc_rows, approx):
    p = pl.program_id(0)
    b = pl.program_id(1)

    @pl.when(b == 0)
    def _():
        acc_ref[...] = jnp.zeros_like(acc_ref)

    x = logits_ref[...].astype(jnp.float32)
    is_pos = label_ref[...] == 1          # works for float / int8 / bool labels

    # alpha where label==1 else (1 - alpha)
    alpha_w = jnp.where(is_pos, jnp.float32(alpha), jnp.float32(1.0 - alpha))

    # One exp, one log, one (approx) reciprocal per element, all sharing s.
    e = jnp.exp(-jnp.abs(x))
    s = 1.0 + e
    if approx:
        r = pl.reciprocal(s, approx=True)     # single EUP vrcp push
    else:
        r = 1.0 / s
    log_s = jnp.log(s)                        # == log1p(e) up to <1e-7 for |x|>17

    # Numerically stable BCEWithLogitsLoss for binary labels:
    #   max(x, 0) - x*y + log(1 + exp(-|x|)),  with x*y -> where(is_pos, x, 0)
    ce = jnp.maximum(x, 0.0) - jnp.where(is_pos, x, jnp.float32(0.0)) + log_s

    # sigmoid(x) = r (x>=0) else e*r ;  1 - pt = 1 - sig (label==1) else sig
    # folded into a single select:
    one_minus_pt = jnp.where(is_pos == (x >= 0.0), e * r, r)

    # Integer-gamma fast path on the VPU (avoids jnp.power's exp/log pair).
    g = float(gamma)
    if g == 0.0:
        w = jnp.ones_like(one_minus_pt)
    elif g == float(int(g)) and 0 < int(g) <= 8:
        w = one_minus_pt
        for _ in range(int(g) - 1):
            w = w * one_minus_pt
    else:
        w = jnp.power(one_minus_pt, jnp.float32(g))

    loss = alpha_w * w * ce

    def _fold(v):
        # Leading-axis fold onto the small (acc_rows, lane) accumulator:
        # pure sublane-aligned VPU adds, no XLU work in steady state.
        if block_rows == acc_rows:
            return v
        return v.reshape(block_rows // acc_rows, acc_rows, lane).sum(axis=0)

    # Ragged-tail handling: the remainder is known at trace time, only the
    # block position is runtime. Full blocks take the unmasked fast path.
    row_start = (p * blocks_per_par + b) * block_rows
    rem = total - row_start * lane            # valid elements from block start
    is_full = rem >= block_rows * lane

    @pl.when(is_full)
    def _():
        acc_ref[...] += _fold(loss)

    @pl.when(jnp.logical_not(is_full))
    def _():
        idx = (jax.lax.broadcasted_iota(jnp.int32, (block_rows, lane), 0) * lane
               + jax.lax.broadcasted_iota(jnp.int32, (block_rows, lane), 1))
        acc_ref[...] += _fold(jnp.where(idx < rem, loss, jnp.float32(0.0)))

    @pl.when(b == pl.num_programs(1) - 1)
    def _():
        total_loss = jnp.sum(acc_ref[...]) * jnp.float32(inv_count)
        out_ref[...] = total_loss.reshape(1, 1, 1)


def focal_loss(logits, label, *, alpha=0.25, gamma=2, reduction='mean',
               lane=1024, max_block_rows=None, num_parallel=None,
               approx_reciprocal=True):
    """Pallas TPU focal loss matching pysot FocalLoss.forward ('mean'/'sum').

    Labels may be float, int8 or bool; they are only compared against 1
    in-kernel, so narrow label dtypes cut HBM traffic on mem-bound chips.
    """
    if reduction not in ('mean', 'sum'):
        # TODO(synk): reduction='none' would return the (N, W, H) per-location
        # channel-summed loss map; only the scalar 'mean'/'sum' reductions are
        # implemented in-kernel here.
        raise NotImplementedError("only reduction='mean'/'sum' is supported")

    N, C, W, H = logits.shape
    label = label.reshape(N, C, W, H)

    total = N * C * W * H
    # mean over (N, W, H) of the channel-summed loss == global sum / (N*W*H)
    inv_count = 1.0 / float(N * W * H) if reduction == 'mean' else 1.0

    # --- lane-dense 2-D view (zero-copy when total divides the lane width) ---
    if total % lane == 0:
        logits2d = logits.reshape(total // lane, lane)
        label2d = label.reshape(total // lane, lane)
    else:
        # TODO(synk): only the sub-`lane` ragged tail still costs a pad+copy
        # here; everything coarser is masked in-kernel. Pad values are masked
        # out by the in-kernel validity check, so zeros are fine.
        pad = lane - total % lane
        logits2d = jnp.concatenate(
            [logits.reshape(-1), jnp.zeros((pad,), logits.dtype)]
        ).reshape(-1, lane)
        label2d = jnp.concatenate(
            [label.reshape(-1), jnp.zeros((pad,), label.dtype)]
        ).reshape(-1, lane)
    rows = logits2d.shape[0]

    # --- tile sizing: ~8 MiB of double-buffered inputs, dtype-aware ----------
    if max_block_rows is None:
        per_row_bytes = lane * (logits2d.dtype.itemsize + label2d.dtype.itemsize)
        max_block_rows = max(8, min(1024, ((8 << 20) // (2 * per_row_bytes)) // 8 * 8))

    if rows <= 8:
        block_rows = rows                     # full-dim block (tiny inputs)
        num_blocks = 1
    else:
        block_rows = min(max_block_rows, _round_up(rows, 8))
        num_blocks = pl.cdiv(rows, block_rows)

    if num_parallel is None:
        num_parallel = _default_num_parallel_cores()
    n_par = num_parallel if num_blocks >= 2 else 1
    blocks_per_par = pl.cdiv(num_blocks, n_par)
    # Grid may overshoot; overshooting blocks are clamped in the index_map and
    # fully zero-masked in-kernel.
    max_block_idx = pl.cdiv(rows, block_rows) - 1

    acc_rows = 8 if block_rows % 8 == 0 else block_rows

    def _in_map(p, b):
        return (jnp.minimum(p * blocks_per_par + b, max_block_idx), 0)

    kernel = functools.partial(
        _focal_loss_kernel,
        alpha=float(alpha), gamma=float(gamma), inv_count=float(inv_count),
        total=int(total), lane=int(lane), block_rows=int(block_rows),
        blocks_per_par=int(blocks_per_par), acc_rows=int(acc_rows),
        approx=bool(approx_reciprocal))

    bytes_accessed = rows * lane * (logits2d.dtype.itemsize
                                    + label2d.dtype.itemsize) + 4 * n_par
    cost = pl.CostEstimate(flops=14 * rows * lane,
                           transcendentals=3 * rows * lane,
                           bytes_accessed=bytes_accessed)

    partials = pl.pallas_call(
        kernel,
        out_shape=jax.ShapeDtypeStruct((n_par, 1, 1), jnp.float32),
        grid_spec=pltpu.PrefetchScalarGridSpec(
            num_scalar_prefetch=0,
            grid=(n_par, blocks_per_par),
            in_specs=[
                pl.BlockSpec((block_rows, lane), _in_map),
                pl.BlockSpec((block_rows, lane), _in_map),
            ],
            out_specs=pl.BlockSpec((1, 1, 1), lambda p, b: (p, 0, 0)),
            scratch_shapes=[pltpu.VMEM((acc_rows, lane), jnp.float32)],
        ),
        compiler_params=pltpu.CompilerParams(
            dimension_semantics=("parallel", "arbitrary")),
        cost_estimate=cost,
    )(logits2d, label2d)

    return jnp.sum(partials)


def _focal_loss_ref(logits, label, alpha=0.25, gamma=2, reduction='mean'):
    """Pure-JAX reference mirroring the PyTorch module."""
    b, c, w, h = logits.shape
    logits = logits.astype(jnp.float32)
    label = label.reshape(b, c, w, h)
    alpha_w = jnp.where(label == 1, alpha, 1.0 - alpha).astype(jnp.float32)
    probs = jax.nn.sigmoid(logits)
    pt = jnp.where(label == 1, probs, 1.0 - probs)
    y = (label == 1).astype(jnp.float32)
    ce = jnp.maximum(logits, 0.0) - logits * y + jnp.log1p(jnp.exp(-jnp.abs(logits)))
    loss = (alpha_w * jnp.power(1.0 - pt, gamma) * ce).sum(axis=1)
    if reduction == 'mean':
        return loss.mean()
    if reduction == 'sum':
        return loss.sum()
    return loss


if __name__ == "__main__":
    key = jax.random.PRNGKey(0)
    k1, k2, k3, k4, k5, k6 = jax.random.split(key, 6)

    # Small shape implied by the module's (N, C, W, H) forward.
    N, C, W, H = 2, 4, 16, 16
    logits = jax.random.normal(k1, (N, C, W, H), dtype=jnp.float32)
    label = (jax.random.uniform(k2, (N, C, W, H)) > 0.7).astype(jnp.float32)

    out_mean = jax.block_until_ready(
        focal_loss(logits, label, alpha=0.25, gamma=2, reduction='mean'))
    ref_mean = _focal_loss_ref(logits, label, alpha=0.25, gamma=2,
                               reduction='mean')
    assert jnp.allclose(out_mean, ref_mean, rtol=2e-3, atol=1e-4), \
        (out_mean, ref_mean)

    out_sum = jax.block_until_ready(
        focal_loss(logits, label, alpha=0.25, gamma=2, reduction='sum'))
    ref_sum = _focal_loss_ref(logits, label, alpha=0.25, gamma=2,
                              reduction='sum')
    assert jnp.allclose(out_sum, ref_sum, rtol=2e-3, atol=1e-3), \
        (out_sum, ref_sum)

    # Narrow-dtype labels (int8) stream 5 B/elem instead of 8 B/elem.
    out_i8 = jax.block_until_ready(
        focal_loss(logits, label.astype(jnp.int8), reduction='mean'))
    assert jnp.allclose(out_i8, ref_mean, rtol=2e-3, atol=1e-4), \
        (out_i8, ref_mean)

    # Ragged total (not a multiple of the 1024-wide slab) exercises the
    # in-kernel validity-mask path.
    N2, C2, W2, H2 = 2, 3, 25, 25
    logits2 = jax.random.normal(k3, (N2, C2, W2, H2), dtype=jnp.float32)
    label2 = (jax.random.uniform(k4, (N2, C2, W2, H2)) > 0.7).astype(jnp.float32)
    out2 = jax.block_until_ready(focal_loss(logits2, label2, reduction='mean'))
    ref2 = _focal_loss_ref(logits2, label2, reduction='mean')
    assert jnp.allclose(out2, ref2, rtol=2e-3, atol=1e-4), (out2, ref2)

    # Multi-block + 2-way parallel axis + partial trailing block.
    N3, C3, W3, H3 = 2, 4, 32, 40
    logits3 = jax.random.normal(k5, (N3, C3, W3, H3), dtype=jnp.float32)
    label3 = (jax.random.uniform(k6, (N3, C3, W3, H3)) > 0.7).astype(jnp.float32)
    out3 = jax.block_until_ready(
        focal_loss(logits3, label3, reduction='mean',
                   max_block_rows=8, num_parallel=2))
    ref3 = _focal_loss_ref(logits3, label3, reduction='mean')
    assert jnp.allclose(out3, ref3, rtol=2e-3, atol=1e-4), (out3, ref3)

    print("KERNEL_OK")
</pallas_src>

<mosaic_0001>
module attributes {stable_mosaic.version = 11 : i64} {
  func.func @_focal_loss_kernel(%arg0: i32, %arg1: i32, %arg2: memref<2x1024xf32, #tpu.memory_space<vmem>>, %arg3: memref<2x1024xf32, #tpu.memory_space<vmem>>, %arg4: memref<1x1x1xf32, #tpu.memory_space<vmem>>, %arg5: memref<2x1024xf32, #tpu.memory_space<vmem>>) attributes {dimension_semantics = [#tpu.dimension_semantics<parallel>, #tpu.dimension_semantics<arbitrary>], iteration_bounds = array<i64: 1, 1>, scalar_prefetch = 0 : i64, scratch_operands = 1 : i64, tpu.core_type = #tpu.core_type<tc>, window_params = [{transform_indices = @transform_0, window_bounds = array<i64: 2, 1024>}, {transform_indices = @transform_1, window_bounds = array<i64: 2, 1024>}, {transform_indices = @transform_2, window_bounds = array<i64: 1, 1, 1>}]} {
    %c0_i32 = arith.constant 0 : i32
    %0 = arith.cmpi eq, %arg1, %c0_i32 : i32
    %1 = arith.extui %0 : i1 to i32
    %c0_i32_0 = arith.constant 0 : i32
    %2 = arith.cmpi ne, %1, %c0_i32_0 : i32
    scf.if %2 {
      %cst_17 = arith.constant 0.000000e+00 : f32
      %47 = vector.broadcast %cst_17 : f32 to vector<2x1024xf32>
      %c0_18 = arith.constant 0 : index
      %c0_19 = arith.constant 0 : index
      %48 = vector.load %arg5[%c0_18, %c0_19] : memref<2x1024xf32, #tpu.memory_space<vmem>>, vector<2x1024xf32>
      tpu.vector_store %arg5[%c0_18, %c0_19], %47 {strides = array<i32>} : memref<2x1024xf32, #tpu.memory_space<vmem>>, vector<2x1024xf32>,
    } else {
    }
    %c0 = arith.constant 0 : index
    %c0_1 = arith.constant 0 : index
    %3 = vector.load %arg2[%c0, %c0_1] : memref<2x1024xf32, #tpu.memory_space<vmem>>, vector<2x1024xf32>
    %c0_2 = arith.constant 0 : index
    %c0_3 = arith.constant 0 : index
    %4 = vector.load %arg3[%c0_2, %c0_3] : memref<2x1024xf32, #tpu.memory_space<vmem>>, vector<2x1024xf32>
    %cst = arith.constant 1.000000e+00 : f32
    %5 = vector.broadcast %cst : f32 to vector<2x1024xf32>
    %6 = arith.cmpf oeq, %4, %5 : vector<2x1024xf32>
    %cst_4 = arith.constant 2.500000e-01 : f32
    %cst_5 = arith.constant 7.500000e-01 : f32
    %7 = vector.broadcast %cst_4 : f32 to vector<2x1024xf32>
    %8 = vector.broadcast %cst_5 : f32 to vector<2x1024xf32>
    %9 = arith.select %6, %7, %8 : vector<2x1024xi1>, vector<2x1024xf32>
    %10 = math.absf %3 : vector<2x1024xf32>
    %cst_6 = arith.constant 0.000000e+00 : f32
    %11 = vector.broadcast %cst_6 : f32 to vector<2x1024xf32>
    %12 = arith.subf %11, %10 : vector<2x1024xf32>
    %13 = math.exp %12 : vector<2x1024xf32>
    %cst_7 = arith.constant 1.000000e+00 : f32
    %14 = vector.broadcast %cst_7 : f32 to vector<2x1024xf32>
    %15 = arith.addf %14, %13 : vector<2x1024xf32>
    %16 = tpu.reciprocal %15 {approx = true} : vector<2x1024xf32> -> vector<2x1024xf32>
    %17 = math.log %15 : vector<2x1024xf32>
    %cst_8 = arith.constant 0.000000e+00 : f32
    %18 = vector.broadcast %cst_8 : f32 to vector<2x1024xf32>
    %19 = arith.maximumf %3, %18 : vector<2x1024xf32>
    %cst_9 = arith.constant 0.000000e+00 : f32
    %20 = vector.broadcast %cst_9 : f32 to vector<2x1024xf32>
    %21 = arith.select %6, %3, %20 : vector<2x1024xi1>, vector<2x1024xf32>
    %22 = arith.subf %19, %21 : vector<2x1024xf32>
    %23 = arith.addf %22, %17 : vector<2x1024xf32>
    %cst_10 = arith.constant 0.000000e+00 : f32
    %24 = vector.broadcast %cst_10 : f32 to vector<2x1024xf32>
    %25 = arith.cmpf oge, %3, %24 : vector<2x1024xf32>
    %26 = arith.xori %6, %25 : vector<2x1024xi1>
    %cst_11 = arith.constant dense<true> : vector<2x1024xi1>
    %27 = arith.xori %26, %cst_11 : vector<2x1024xi1>
    %28 = arith.mulf %13, %16 : vector<2x1024xf32>
    %29 = arith.select %27, %28, %16 : vector<2x1024xi1>, vector<2x1024xf32>
    %30 = arith.mulf %29, %29 : vector<2x1024xf32>
    %31 = arith.mulf %9, %30 : vector<2x1024xf32>
    %32 = arith.mulf %31, %23 : vector<2x1024xf32>
    %c1_i32 = arith.constant 1 : i32
    %33 = arith.muli %arg0, %c1_i32 : i32
    %34 = arith.addi %33, %arg1 : i32
    %c2_i32 = arith.constant 2 : i32
    %35 = arith.muli %34, %c2_i32 : i32
    %c1024_i32 = arith.constant 1024 : i32
    %36 = arith.muli %35, %c1024_i32 : i32
    %c2048_i32 = arith.constant 2048 : i32
    %37 = arith.subi %c2048_i32, %36 : i32
    %c2048_i32_12 = arith.constant 2048 : i32
    %38 = arith.cmpi sge, %37, %c2048_i32_12 : i32
    %39 = arith.extui %38 : i1 to i32
    %c0_i32_13 = arith.constant 0 : i32
    %40 = arith.cmpi ne, %39, %c0_i32_13 : i32
    scf.if %40 {
      %c0_17 = arith.constant 0 : index
      %c0_18 = arith.constant 0 : index
      %47 = vector.load %arg5[%c0_17, %c0_18] : memref<2x1024xf32, #tpu.memory_space<vmem>>, vector<2x1024xf32>
      %48 = arith.addf %47, %32 : vector<2x1024xf32>
      %c0_19 = arith.constant 0 : index
      %c0_20 = arith.constant 0 : index
      %49 = vector.load %arg5[%c0_19, %c0_20] : memref<2x1024xf32, #tpu.memory_space<vmem>>, vector<2x1024xf32>
      tpu.vector_store %arg5[%c0_19, %c0_20], %48 {strides = array<i32>} : memref<2x1024xf32, #tpu.memory_space<vmem>>, vector<2x1024xf32>,
    } else {
    }
    %true = arith.constant true
    %41 = arith.xori %38, %true : i1
    %42 = arith.extui %41 : i1 to i32
    %c0_i32_14 = arith.constant 0 : i32
    %43 = arith.cmpi ne, %42, %c0_i32_14 : i32
    scf.if %43 {
      %47 = tpu.iota {dimensions = array<i32: 0>} : vector<2x1024xi32>
      %c1024_i32_17 = arith.constant 1024 : i32
      %48 = vector.broadcast %c1024_i32_17 : i32 to vector<2x1024xi32>
      %49 = arith.muli %47, %48 : vector<2x1024xi32>
      %50 = tpu.iota {dimensions = array<i32: 1>} : vector<2x1024xi32>
      %51 = arith.addi %49, %50 : vector<2x1024xi32>
      %c0_18 = arith.constant 0 : index
      %c0_19 = arith.constant 0 : index
      %52 = vector.load %arg5[%c0_18, %c0_19] : memref<2x1024xf32, #tpu.memory_space<vmem>>, vector<2x1024xf32>
      %53 = vector.broadcast %37 : i32 to vector<2x1024xi32>
      %54 = arith.cmpi slt, %51, %53 : vector<2x1024xi32>
      %cst_20 = arith.constant 0.000000e+00 : f32
      %55 = vector.broadcast %cst_20 : f32 to vector<2x1024xf32>
      %56 = arith.select %54, %32, %55 : vector<2x1024xi1>, vector<2x1024xf32>
      %57 = arith.addf %52, %56 : vector<2x1024xf32>
      %c0_21 = arith.constant 0 : index
      %c0_22 = arith.constant 0 : index
      %58 = vector.load %arg5[%c0_21, %c0_22] : memref<2x1024xf32, #tpu.memory_space<vmem>>, vector<2x1024xf32>
      tpu.vector_store %arg5[%c0_21, %c0_22], %57 {strides = array<i32>} : memref<2x1024xf32, #tpu.memory_space<vmem>>, vector<2x1024xf32>,
    } else {
    }
    %c0_i32_15 = arith.constant 0 : i32
    %44 = arith.cmpi eq, %arg1, %c0_i32_15 : i32
    %45 = arith.extui %44 : i1 to i32
    %c0_i32_16 = arith.constant 0 : i32
    %46 = arith.cmpi ne, %45, %c0_i32_16 : i32
    scf.if %46 {
      %c0_17 = arith.constant 0 : index
      %c0_18 = arith.constant 0 : index
      %47 = vector.load %arg5[%c0_17, %c0_18] : memref<2x1024xf32, #tpu.memory_space<vmem>>, vector<2x1024xf32>
      %48 = vector.shape_cast %47 : vector<2x1024xf32> to vector<1x2x1024xf32>
      %cst_19 = arith.constant dense<0.000000e+00> : vector<1xf32>
      %49 = vector.multi_reduction <add>, %48, %cst_19 [1, 2] : vector<1x2x1024xf32> to vector<1xf32>
      %50 = vector.shape_cast %49 : vector<1xf32> to vector<1x1x1xf32>
      %51 = vector.extract %50[0, 0, 0] : f32 from vector<1x1x1xf32>
      %cst_20 = arith.constant 0.001953125 : f32
      %52 = arith.mulf %51, %cst_20 : f32
      %53 = vector.broadcast %52 : f32 to vector<1x1x1xf32>
      %c0_21 = arith.constant 0 : index
      %c0_22 = arith.constant 0 : index
      %c0_23 = arith.constant 0 : index
      %54 = vector.load %arg4[%c0_21, %c0_22, %c0_23] : memref<1x1x1xf32, #tpu.memory_space<vmem>>, vector<1x1x1xf32>
      tpu.vector_store %arg4[%c0_21, %c0_22, %c0_23], %53 {strides = array<i32>} : memref<1x1x1xf32, #tpu.memory_space<vmem>>, vector<1x1x1xf32>,
    } else {
    }
    return
  }
  func.func @transform_0(%arg0: i32, %arg1: i32) -> (i32, i32) {
    %c1_i32 = arith.constant 1 : i32
    %0 = arith.muli %arg0, %c1_i32 : i32
    %1 = arith.addi %0, %arg1 : i32
    %c0_i32 = arith.constant 0 : i32
    %2 = arith.minsi %1, %c0_i32 : i32
    %c0_i32_0 = arith.constant 0 : i32
    %c0_i32_1 = arith.constant 0 : i32
    return %2, %c0_i32_0 : i32, i32
  }
  func.func @transform_1(%arg0: i32, %arg1: i32) -> (i32, i32) {
    %c1_i32 = arith.constant 1 : i32
    %0 = arith.muli %arg0, %c1_i32 : i32
    %1 = arith.addi %0, %arg1 : i32
    %c0_i32 = arith.constant 0 : i32
    %2 = arith.minsi %1, %c0_i32 : i32
    %c0_i32_0 = arith.constant 0 : i32
    %c0_i32_1 = arith.constant 0 : i32
    return %2, %c0_i32_0 : i32, i32
  }
  func.func @transform_2(%arg0: i32, %arg1: i32) -> (i32, i32, i32) {
    %c0_i32 = arith.constant 0 : i32
    %c0_i32_0 = arith.constant 0 : i32
    %c0_i32_1 = arith.constant 0 : i32
    return %arg0, %c0_i32, %c0_i32_0 : i32, i32, i32
  }
}

</mosaic_0001>

<llo_original>
// kernel: tpu_custom_call.1
$region0: #{tpu_custom_call.1}
  #allocation0 [shape = 'u32[]', space=smem, size = 0x4, offset = 0x4, fixed_abs, tag = 'smem constant byte address 0x4 - core index']
  #allocation1 [shape = 'u32[144,128]{1,0:T(1,128)}', space=vmem, size = 0x12000, scoped, tag = 'internal scratch']
  #allocation2 [shape = 'f32[2,1024]{1,0:T(2,128)}', space=vmem, size = 0x2000, scoped, tag = 'scratch operand']
  %s0 = inlined_call_operand.hbm [shape: f32[2,1024], index: 0, kind: input, shape index: {}]
  %s1 = inlined_call_operand.hbm [shape: f32[2,1024], index: 1, kind: input, shape index: {}]
  %s2 = inlined_call_operand.hbm [shape: f32[1,1,1], index: 2, kind: output, shape index: {}]
  %s3 = sld [smem:[#allocation0]]
  $region42: #{tpu_custom_call.1} parent=0
    _
  %s5 = ssub.s32 1, %s3
  %s6 = scalar_select 0, %s5, %s3
  $region1: #{tpu_custom_call.1} parent=0
    #allocation3 [shape = 'u8[8192]{0}', space=vmem, size = 0x2000, scoped, tag = 'input window, operand 0, single buffered']
    #allocation4 [shape = 's32[1]{0}', space=sflag, size = 0x4, scoped, tag = 'scoped memory for tpu_custom_call.1']
    #allocation5 [shape = 's32[1]{0}', space=sflag, size = 0x4, scoped, tag = 'scoped memory for tpu_custom_call.1']
    #allocation6 [shape = 'u8[8192]{0}', space=vmem, size = 0x2000, scoped, tag = 'input window, operand 1, single buffered']
    #allocation7 [shape = 's32[1]{0}', space=sflag, size = 0x4, scoped, tag = 'scoped memory for tpu_custom_call.1']
    #allocation8 [shape = 'u8[512]{0}', space=vmem, size = 0x400, scoped, tag = 'output window, operand 0, single buffered']
    %7 = vsyncpa [#allocation4], 0
    %8 = vsyncpa [#allocation7], 0
    %9 = vsyncpa [#allocation5], 0
    // Predicated region
    $region2: #{tpu_custom_call.1} parent=1 // pred_check
      _
    $region3: #{tpu_custom_call.1} parent=1 // pred_check_branch
      %11 = sbr.rel (0) target = $region5
    $region4: #{tpu_custom_call.1} parent=1 // pred_region
      %s12 = sadd.s32 0, 0
      %p13 = scmp.lt.s32.totalorder %s12, 0
      %s14 = scalar_select %p13, %s12, 0
      %s16 = ssub.s32 256, 256
      %17 = vsyncadd [#allocation4], %s16
      %s18 = smul.addr %s14, 8
      %s19 = smul.addr %s18, 32
      %s20 = scalar_lea.hbm %s0, %s19
      %s22 = sshll.u32 [#allocation3], 4
      %s23 = int_to_ptr.vmem [resolvable:$true] %s22
      %25 = dma.hbm_to_vmem [thread:$0]  %s20, 256, %s23, [#allocation4]
    $region5: #{tpu_custom_call.1} parent=1 // pred_fallthru
      _
    // Predicated region
    $region6: #{tpu_custom_call.1} parent=1 // pred_check
      _
    $region7: #{tpu_custom_call.1} parent=1 // pred_check_branch
      %27 = sbr.rel (0) target = $region9
    $region8: #{tpu_custom_call.1} parent=1 // pred_region
      %s28 = sadd.s32 0, 0
      %p29 = scmp.lt.s32.totalorder %s28, 0
      %s30 = scalar_select %p29, %s28, 0
      %s32 = ssub.s32 256, 256
      %33 = vsyncadd [#allocation7], %s32
      %s34 = smul.addr %s30, 8
      %s35 = smul.addr %s34, 32
      %s36 = scalar_lea.hbm %s1, %s35
      %s38 = sshll.u32 [#allocation6], 4
      %s39 = int_to_ptr.vmem [resolvable:$true] %s38
      %41 = dma.hbm_to_vmem [thread:$0]  %s36, 256, %s39, [#allocation7]
    $region9: #{tpu_custom_call.1} parent=1 // pred_fallthru
      _
    // Predicated region
    $region10: #{tpu_custom_call.1} parent=1 // pred_check
      _
    $region11: #{tpu_custom_call.1} parent=1 // pred_check_branch
      %43 = sbr.rel (0) target = $region13
    $region12: #{tpu_custom_call.1} parent=1 // pred_region
      %44 = dma.done [#allocation4], 256
    $region13: #{tpu_custom_call.1} parent=1 // pred_fallthru
      _
    // Predicated region
    $region14: #{tpu_custom_call.1} parent=1 // pred_check
      _
    $region15: #{tpu_custom_call.1} parent=1 // pred_check_branch
      %46 = sbr.rel (0) target = $region17
    $region16: #{tpu_custom_call.1} parent=1 // pred_region
      %47 = dma.done [#allocation7], 256
    $region17: #{tpu_custom_call.1} parent=1 // pred_fallthru
      _
    %s48 = sadd.s32 0, 0
    %p49 = scmp.lt.s32.totalorder %s48, 0
    %s50 = scalar_select %p49, %s48, 0
    %s51 = sadd.s32 0, 0
    %p52 = scmp.lt.s32.totalorder %s51, 0
    %s53 = scalar_select %p52, %s51, 0
    %p54 = scmp.eq.s32.totalorder 0, 0
    // Predicated region
    $region18: #{tpu_custom_call.1} parent=1 // pred_check
      %p55 = pneg %p54
    $region19: #{tpu_custom_call.1} parent=1 // pred_check_branch
      %57 = sbr.rel (%p55) target = $region21
    $region20: #{tpu_custom_call.1} parent=1 // pred_region
      %58 = vst [vmem:[#allocation2] sm:$0xff] 0.0
      %59 = vst [vmem:[#allocation2 + $0x8] sm:$0xff] 0.0
    $region21: #{tpu_custom_call.1} parent=1 // pred_fallthru
      _
    %v60 = vld [vmem:[#allocation3] sm:$0xff]
    %v61 = vld [vmem:[#allocation3 + $0x8] sm:$0xff]
    %v62 = vld [vmem:[#allocation6] sm:$0xff]
    %v63 = vld [vmem:[#allocation6 + $0x8] sm:$0xff]
    %vm64 = vcmp.eq.f32.partialorder %v62, 1.0
    %vm65 = vcmp.eq.f32.partialorder %v63, 1.0
    %v66 = vsel %vm64, 0.25, 0.75
    %v67 = vsel %vm65, 0.25, 0.75
    %v68 = vand.u32 2147483647, %v60
    %v69 = vand.u32 2147483647, %v61
    %v70 = vsub.f32 0.0, %v68
    %v71 = vsub.f32 0.0, %v69
    %v72 = vmul.f32 %v70, 1.442695
    %v73 = vpow.pop %v72
    %v74 = vmul.f32 %v71, 1.442695
    %v75 = vpow.pop %v74
    %v76 = vadd.f32 %v73, 1.0
    %v77 = vadd.f32 %v75, 1.0
    %v78 = vrcp.pop %v76
    %v79 = vrcp.pop %v77
    %v80 = vlog2.pop %v76
    %v81 = vmul.f32 %v80, 0.6931472
    %v82 = vlog2.pop %v77
    %v83 = vmul.f32 %v82, 0.6931472
    %v84 = vmax.f32 %v60, 0.0
    %v85 = vmax.f32 %v61, 0.0
    %v86 = vsel %vm64, %v60, 0.0
    %v87 = vsel %vm65, %v61, 0.0
    %v88 = vsub.f32 %v84, %v86
    %v89 = vsub.f32 %v85, %v87
    %v90 = vadd.f32 %v88, %v81
    %v91 = vadd.f32 %v89, %v83
    %vm92 = vcmp.ge.f32.partialorder %v60, 0.0
    %vm93 = vcmp.ge.f32.partialorder %v61, 0.0
    %vm94 = vmxor %vm64, %vm92
    %vm95 = vmxor %vm65, %vm93
    %vm96 = vmxor %vm94, 1
    %vm97 = vmxor %vm95, 1
    %v98 = vmul.f32 %v73, %v78
    %v99 = vmul.f32 %v75, %v79
    %v100 = vsel %vm96, %v98, %v78
    %v101 = vsel %vm97, %v99, %v79
    %v102 = vmul.f32 %v100, %v100
    %v103 = vmul.f32 %v101, %v101
    %v104 = vmul.f32 %v66, %v102
    %v105 = vmul.f32 %v67, %v103
    %v106 = vmul.f32 %v104, %v90
    %v107 = vmul.f32 %v105, %v91
    %s108 = sadd.s32 0, 0
    %s109 = smul.u32 %s108, 2048
    %s110 = ssub.s32 2048, %s109
    %p111 = scmp.ge.s32.totalorder %s110, 2048
    // Predicated region
    $region22: #{tpu_custom_call.1} parent=1 // pred_check
      %p112 = pneg %p111
    $region23: #{tpu_custom_call.1} parent=1 // pred_check_branch
      %114 = sbr.rel (%p112) target = $region25
    $region24: #{tpu_custom_call.1} parent=1 // pred_region
      %v115 = vld [vmem:[#allocation2] sm:$0xff]
      %v116 = vld [vmem:[#allocation2 + $0x8] sm:$0xff]
      %v117 = vadd.f32 %v115, %v106
      %v118 = vadd.f32 %v116, %v107
      %119 = vst [vmem:[#allocation2] sm:$0xff] %v117
      %120 = vst [vmem:[#allocation2 + $0x8] sm:$0xff] %v118
    $region25: #{tpu_custom_call.1} parent=1 // pred_fallthru
      _
    %p121 = scmp.lt.s32.totalorder %s110, 2048
    // Predicated region
    $region26: #{tpu_custom_call.1} parent=1 // pred_check
      %p122 = pneg %p121
    $region27: #{tpu_custom_call.1} parent=1 // pred_check_branch
      %124 = sbr.rel (%p122) target = $region29
    $region28: #{tpu_custom_call.1} parent=1 // pred_region
      %v125 = vlaneseq
      %v126 = vshrl.u32 %v125, 7
      %v127 = vmul.u32 %v126, 1024
      %v128 = vlaneseq
      %v129 = vand.u32 %v128, 127
      %v130 = vadd.s32 %v129, 128
      %v131 = vadd.s32 %v129, 256
      %v132 = vadd.s32 %v129, 384
      %v133 = vadd.s32 %v129, 512
      %v134 = vadd.s32 %v129, 640
      %v135 = vadd.s32 %v129, 768
      %v136 = vadd.s32 %v129, 896
      %v137 = vadd.s32 %v127, %v129
      %v138 = vadd.s32 %v127, %v130
      %v139 = vadd.s32 %v127, %v131
      %v140 = vadd.s32 %v127, %v132
      %v141 = vadd.s32 %v127, %v133
      %v142 = vadd.s32 %v127, %v134
      %v143 = vadd.s32 %v127, %v135
      %v144 = vadd.s32 %v127, %v136
      %v145 = vld [vmem:[#allocation2] sm:$0xff]
      %v146 = vld [vmem:[#allocation2 + $0x8] sm:$0xff]
      %v147 = vstv %s110
      %vm148 = vcmp.lt.s32.totalorder %v137, %v147
      %vm149 = vcmp.lt.s32.totalorder %v138, %v147
      %vm150 = vcmp.lt.s32.totalorder %v139, %v147
      %vm151 = vcmp.lt.s32.totalorder %v140, %v147
      %vm152 = vcmp.lt.s32.totalorder %v141, %v147
      %vm153 = vcmp.lt.s32.totalorder %v142, %v147
      %vm154 = vcmp.lt.s32.totalorder %v143, %v147
      %vm155 = vcmp.lt.s32.totalorder %v144, %v147
      %v158 = vcombine.high %v106, %v106
      %v160 = vunpack.c.l.s4 1983009808
      %v161 = vunpack.c.0.s8 %v160
      %v162 = vlaneseq
      %v163 = vshrl.u32 %v162, 7
      %v164 = vsub.s32 %v161, %v163
      %v165 = vrot.slane %v106, %v164
      %v167 = vunpack.c.l.s4 1983009808
      %v168 = vunpack.c.0.s8 %v167
      %v169 = vlaneseq
      %v170 = vshrl.u32 %v169, 7
      %v171 = vsub.s32 %v168, %v170
      %v172 = vrot.slane %v158, %v171
      %v173 = vcombine.high %v165, %v165
      %v174 = vcombine.high %v172, %v172
      %v175 = vcombine.high %v107, %v107
      %v177 = vunpack.c.l.s4 1983009808
      %v178 = vunpack.c.0.s8 %v177
      %v179 = vlaneseq
      %v180 = vshrl.u32 %v179, 7
      %v181 = vsub.s32 %v178, %v180
      %v182 = vrot.slane %v107, %v181
      %v184 = vunpack.c.l.s4 1983009808
      %v185 = vunpack.c.0.s8 %v184
      %v186 = vlaneseq
      %v187 = vshrl.u32 %v186, 7
      %v188 = vsub.s32 %v185, %v187
      %v189 = vrot.slane %v175, %v188
      %v190 = vcombine.high %v182, %v182
      %v191 = vcombine.high %v189, %v189
      %v200 = vsel %vm148, %v165, 0.0
      %v201 = vsel %vm149, %v173, 0.0
      %v202 = vsel %vm150, %v172, 0.0
      %v203 = vsel %vm151, %v174, 0.0
      %v204 = vsel %vm152, %v182, 0.0
      %v205 = vsel %vm153, %v190, 0.0
      %v206 = vsel %vm154, %v189, 0.0
      %v207 = vsel %vm155, %v191, 0.0
      %v216 = vcombine.low %v200, %v201
      %v217 = vcombine.low %v202, %v203
      %v219 = vunpack.c.l.s4 1983009808
      %v220 = vunpack.c.0.s8 %v219
      %v221 = vlaneseq
      %v222 = vshrl.u32 %v221, 7
      %v223 = vsub.s32 %v220, %v222
      %v224 = vrot.slane %v216, %v223
      %v226 = vunpack.c.l.s4 1983009808
      %v227 = vunpack.c.0.s8 %v226
      %v228 = vlaneseq
      %v229 = vshrl.u32 %v228, 7
      %v230 = vsub.s32 %v227, %v229
      %v231 = vrot.slane %v217, %v230
      %v232 = vcombine.low %v224, %v231
      %v233 = vcombine.low %v204, %v205
      %v234 = vcombine.low %v206, %v207
      %v236 = vunpack.c.l.s4 1983009808
      %v237 = vunpack.c.0.s8 %v236
      %v238 = vlaneseq
      %v239 = vshrl.u32 %v238, 7
      %v240 = vsub.s32 %v237, %v239
      %v241 = vrot.slane %v233, %v240
      %v243 = vunpack.c.l.s4 1983009808
      %v244 = vunpack.c.0.s8 %v243
      %v245 = vlaneseq
      %v246 = vshrl.u32 %v245, 7
      %v247 = vsub.s32 %v244, %v246
      %v248 = vrot.slane %v234, %v247
      %v249 = vcombine.low %v241, %v248
      %v252 = vadd.f32 %v145, %v232
      %v253 = vadd.f32 %v146, %v249
      %254 = vst [vmem:[#allocation2] sm:$0xff] %v252
      %255 = vst [vmem:[#allocation2 + $0x8] sm:$0xff] %v253
    $region29: #{tpu_custom_call.1} parent=1 // pred_fallthru
      _
    // Predicated region
    $region30: #{tpu_custom_call.1} parent=1 // pred_check
      %p256 = pneg %p54
    $region31: #{tpu_custom_call.1} parent=1 // pred_check_branch
      %258 = sbr.rel (%p256) target = $region33
    $region32: #{tpu_custom_call.1} parent=1 // pred_region
      %v259 = vld [vmem:[#allocation2] sm:$0xff]
      %v260 = vld [vmem:[#allocation2 + $0x8] sm:$0xff]
      %v263 = vcombine.high %v259, %v259
      %v265 = vunpack.c.l.s4 1983009808
      %v266 = vunpack.c.0.s8 %v265
      %v267 = vlaneseq
      %v268 = vshrl.u32 %v267, 7
      %v269 = vsub.s32 %v266, %v268
      %v270 = vrot.slane %v259, %v269
      %v272 = vunpack.c.l.s4 1983009808
      %v273 = vunpack.c.0.s8 %v272
      %v274 = vlaneseq
      %v275 = vshrl.u32 %v274, 7
      %v276 = vsub.s32 %v273, %v275
      %v277 = vrot.slane %v263, %v276
      %v278 = vcombine.high %v270, %v270
      %v279 = vcombine.high %v277, %v277
      %v280 = vcombine.high %v260, %v260
      %v282 = vunpack.c.l.s4 1983009808
      %v283 = vunpack.c.0.s8 %v282
      %v284 = vlaneseq
      %v285 = vshrl.u32 %v284, 7
      %v286 = vsub.s32 %v283, %v285
      %v287 = vrot.slane %v260, %v286
      %v289 = vunpack.c.l.s4 1983009808
      %v290 = vunpack.c.0.s8 %v289
      %v291 = vlaneseq
      %v292 = vshrl.u32 %v291, 7
      %v293 = vsub.s32 %v290, %v292
      %v294 = vrot.slane %v280, %v293
      %v295 = vcombine.high %v287, %v287
      %v296 = vcombine.high %v294, %v294
      %vm305 = vcmask 1041408
      %v306 = vsel %vm305, %v270, 0.0
      %v307 = vsel %vm305, %v278, 0.0
      %v308 = vadd.f32 %v306, %v307
      %v309 = vsel %vm305, %v277, 0.0
      %v310 = vadd.f32 %v308, %v309
      %v311 = vsel %vm305, %v279, 0.0
      %v312 = vadd.f32 %v310, %v311
      %v313 = vsel %vm305, %v287, 0.0
      %v314 = vadd.f32 %v312, %v313
      %v315 = vsel %vm305, %v295, 0.0
      %v316 = vadd.f32 %v314, %v315
      %v317 = vsel %vm305, %v294, 0.0
      %v318 = vadd.f32 %v316, %v317
      %v319 = vsel %vm305, %v296, 0.0
      %v320 = vadd.f32 %v318, %v319
      %321 = vadd.xlane.f32.xlu0 %v320
      %v322 = vpop.xlane.xlu0 %321
      %v323 = vrot.slane %v322, 4
      %v324 = vadd.f32 %v322, %v323
      %v325 = vrot.slane %v324, 2
      %v326 = vadd.f32 %v324, %v325
      %v327 = vrot.slane %v326, 1
      %v328 = vadd.f32 %v326, %v327
      %s329 = vtos %v328
      %s330 = smul.f32 %s329, 0.001953125
      %v331 = vstv %s330
      %vm332 = vcmask 0
      %333 = vst.msk [vmem:[#allocation8] sm:$0x1] %vm332, %v331
    $region33: #{tpu_custom_call.1} parent=1 // pred_fallthru
      _
    // Predicated region
    $region34: #{tpu_custom_call.1} parent=1 // pred_check
      _
    $region35: #{tpu_custom_call.1} parent=1 // pred_check_branch
      %335 = sbr.rel (0) target = $region37
    $region36: #{tpu_custom_call.1} parent=1 // pred_region
      %s337 = ssub.s32 16, 16
      %338 = vsyncadd [#allocation5], %s337
      %s340 = sshll.u32 [#allocation8], 4
      %s341 = int_to_ptr.vmem [resolvable:$true] %s340
      %343 = dma.vmem_to_hbm [thread:$0]  %s341, 16, %s2, [#allocation5]
    $region37: #{tpu_custom_call.1} parent=1 // pred_fallthru
      _
    // Predicated region
    $region38: #{tpu_custom_call.1} parent=1 // pred_check
      _
    $region39: #{tpu_custom_call.1} parent=1 // pred_check_branch
      %345 = sbr.rel (0) target = $region41
    $region40: #{tpu_custom_call.1} parent=1 // pred_region
      %346 = dma.done [#allocation5], 16
    $region41: #{tpu_custom_call.1} parent=1 // pred_fallthru
      _
    %347 = vsyncpa [#allocation4], 1
    %348 = vsyncpa [#allocation7], 1
    %349 = vsyncpa [#allocation5], 1

</llo_original>
